<compile_context>
chip_gen: v7x
topology: tpu7x:2x2x1
jax: 0.10.0
libtpu: 0.0.40
codegen_flags: <defaults>
</compile_context>

<pallas_src>
import jax
import jax.numpy as jnp
import numpy as np
from jax.experimental import pallas as pl
from jax.experimental.pallas import tpu as pltpu


# ----------------------------- fused Pallas kernel -------------------------

def make_decoder_kernel(num_layers, batch, hidden_size, embed_dims, vocab,
                        vocab_pad, k_max):
    L, B, H, E, V = num_layers, batch, hidden_size, embed_dims, vocab
    Kmax = k_max
    del vocab_pad  # implied by wfc/bfc/logits shapes

    def kernel(tok_ref,        # SMEM (T, B) i32   (scalar prefetch)
               init_ref,       # (B, 2LH) f32      initial [h | c] slab
               emb_ref,        # (V, E)   bf16     embedding table
               w_ref,          # (L, Kmax, 4H) bf16  stacked [W_ih; W_hh; 0]
               b_ref,          # (L, 1, 4H)    f32   folded b_ih + b_hh
               wfc_ref,        # (H, Vp)  bf16
               bfc_ref,        # (1, Vp)  f32
               logits_ref,     # (1, B, Vp) f32    per-step output block
               state_ref):     # (B, 2LH)  f32     resident carry / final out
        t = pl.program_id(0)

        # ---- step 0: load initial recurrent state into the resident block --
        @pl.when(t == 0)
        def _():
            state_ref[...] = init_ref[...]

        state = state_ref[...]                                # (B, 2LH) f32

        # ---- embedding gather: bf16 one-hot @ bf16 table (one MXU push) ----
        lane = jax.lax.broadcasted_iota(jnp.int32, (B, V), 1)
        row = jax.lax.broadcasted_iota(jnp.int32, (B, V), 0)
        tok_mat = jnp.zeros((B, V), jnp.int32)
        for b in range(B):                       # B scalar reads from SMEM
            tok_mat = jnp.where(row == b, tok_ref[t, b], tok_mat)
        one_hot = (lane == tok_mat).astype(jnp.bfloat16)
        x = jnp.dot(one_hot, emb_ref[...],
                    preferred_element_type=jnp.float32)       # (B, E) f32
        # dropout after embedding: identity (eval mode)

        # ---- multi-layer LSTM single step, state resident in VMEM ----------
        h_news, c_news = [], []
        in_dim = E
        for l in range(L):
            h_l = state[:, l * H:(l + 1) * H]                 # (B, H) f32
            c_l = state[:, (L + l) * H:(L + l + 1) * H]       # (B, H) f32

            # pack [x, h] in registers (no VMEM scratch round trip)
            parts = [x.astype(jnp.bfloat16), h_l.astype(jnp.bfloat16)]
            pad = Kmax - (in_dim + H)
            if pad:
                parts.append(jnp.zeros((B, pad), jnp.bfloat16))
            xh = jnp.concatenate(parts, axis=-1)              # (B, Kmax) bf16

            z = (jnp.dot(xh, w_ref[l], preferred_element_type=jnp.float32)
                 + b_ref[l])                                  # (B, 4H) f32

            # gate order i, f, g, o (PyTorch); slice first, then transcendental
            i_g = jax.nn.sigmoid(z[:, 0 * H:1 * H])
            f_g = jax.nn.sigmoid(z[:, 1 * H:2 * H])
            g_g = jnp.tanh(z[:, 2 * H:3 * H])
            o_g = jax.nn.sigmoid(z[:, 3 * H:4 * H])

            c_new = f_g * c_l + i_g * g_g
            h_new = o_g * jnp.tanh(c_new)
            h_news.append(h_new)
            c_news.append(c_new)
            x = h_new              # inter-layer LSTM dropout: identity (eval)
            in_dim = H

        # ---- single lane-dense state write (one unmasked slab store) -------
        state_ref[...] = jnp.concatenate(h_news + c_news, axis=-1)

        # ---- final projection, lane-dense (vocab padded to 128 lanes) ------
        logits_ref[0] = (jnp.dot(x.astype(jnp.bfloat16), wfc_ref[...],
                                 preferred_element_type=jnp.float32)
                         + bfc_ref[...])

    return kernel


# ----------------------------- wrappers ------------------------------------

def pack_params(params):
    """One-time packing: stack per-layer [W_ih; W_hh] into (L, Kmax, 4H) bf16,
    biases into (L, 1, 4H) f32, embed table to bf16, FC padded to 128 lanes."""
    L = len(params["wih_t"])
    E = params["wih_t"][0].shape[0]
    H = params["whh_t"][0].shape[0]
    Kmax = max(E, H) + H

    w_all = []
    for l in range(L):
        w = jnp.concatenate([params["wih_t"][l], params["whh_t"][l]], axis=0)
        pad = Kmax - w.shape[0]
        if pad:
            w = jnp.pad(w, ((0, pad), (0, 0)))
        w_all.append(w)
    w_all = jnp.stack(w_all).astype(jnp.bfloat16)            # (L, Kmax, 4H)
    b_all = jnp.stack([b.astype(jnp.float32)
                       for b in params["b_lstm"]])           # (L, 1, 4H)

    Hfc, V = params["wfc_t"].shape
    Vp = ((V + 127) // 128) * 128
    wfc_p = jnp.pad(params["wfc_t"], ((0, 0), (0, Vp - V))).astype(jnp.bfloat16)
    bfc_p = jnp.pad(params["bfc"], ((0, 0), (0, Vp - V))).astype(jnp.float32)

    return {"embed": params["embed"].astype(jnp.bfloat16),
            "w_all": w_all, "b_all": b_all, "wfc_t": wfc_p, "bfc": bfc_p}


def decoder_decode(tokens, hidden, cell, kp):
    """Fused multi-step decode: tokens (T, B) int32, teacher-forced.
    Returns (logits (T, B, V), h_new (L, B, H), c_new (L, B, H))."""
    T, B = tokens.shape
    L, _, H = hidden.shape
    V, E = kp["embed"].shape
    Kmax = kp["w_all"].shape[1]
    Vp = kp["wfc_t"].shape[1]

    # pack initial [h | c] into one (B, 2LH) slab (one coalesced DMA)
    state0 = jnp.concatenate(
        [jnp.transpose(hidden, (1, 0, 2)).reshape(B, L * H),
         jnp.transpose(cell, (1, 0, 2)).reshape(B, L * H)], axis=-1)

    grid_spec = pltpu.PrefetchScalarGridSpec(
        num_scalar_prefetch=1,                      # tokens -> SMEM
        grid=(T,),
        in_specs=[
            pl.BlockSpec((B, 2 * L * H), lambda t, tok: (0, 0)),       # state0
            pl.BlockSpec((V, E), lambda t, tok: (0, 0)),               # embed
            pl.BlockSpec((L, Kmax, 4 * H), lambda t, tok: (0, 0, 0)),  # W lstm
            pl.BlockSpec((L, 1, 4 * H), lambda t, tok: (0, 0, 0)),     # b lstm
            pl.BlockSpec((H, Vp), lambda t, tok: (0, 0)),              # W fc
            pl.BlockSpec((1, Vp), lambda t, tok: (0, 0)),              # b fc
        ],
        out_specs=(
            pl.BlockSpec((1, B, Vp), lambda t, tok: (t, 0, 0)),        # logits/step
            pl.BlockSpec((B, 2 * L * H), lambda t, tok: (0, 0)),       # final state
        ),
    )

    logits_p, state_out = pl.pallas_call(
        make_decoder_kernel(L, B, H, E, V, Vp, Kmax),
        grid_spec=grid_spec,
        out_shape=(jax.ShapeDtypeStruct((T, B, Vp), jnp.float32),
                   jax.ShapeDtypeStruct((B, 2 * L * H), jnp.float32)),
        compiler_params=pltpu.CompilerParams(
            dimension_semantics=("arbitrary",)),
    )(tokens.astype(jnp.int32), state0, kp["embed"], kp["w_all"],
      kp["b_all"], kp["wfc_t"], kp["bfc"])

    h_new = state_out[:, :L * H].reshape(B, L, H).transpose(1, 0, 2)
    c_new = state_out[:, L * H:].reshape(B, L, H).transpose(1, 0, 2)
    return logits_p[:, :, :V], h_new, c_new


def decoder_forward(x_tokens, hidden, cell, kp):
    """Mirrors Decoder.forward for one time step (T=1 fused decode)."""
    logits, h_new, c_new = decoder_decode(x_tokens.reshape(1, -1), hidden,
                                          cell, kp)
    return logits[0], h_new, c_new


# ----------------------------- reference (pure JAX) ------------------------

def decoder_step_ref(x_tokens, hidden, cell, params, mxu_dtype=jnp.float32):
    """f32 semantics of the PyTorch module for one step. mxu_dtype=bf16 mimics
    the kernel's bf16 MXU/table inputs (exact products, f32 accumulate)."""
    def mm(a, w):
        return jnp.dot(a.astype(mxu_dtype).astype(jnp.float32),
                       w.astype(mxu_dtype).astype(jnp.float32),
                       preferred_element_type=jnp.float32)

    table = params["embed"].astype(mxu_dtype).astype(jnp.float32)
    emb = jnp.take(table, x_tokens, axis=0)
    layer_in = emb
    H = hidden.shape[-1]
    new_h, new_c = [], []
    for l in range(hidden.shape[0]):
        z = (mm(layer_in, params["wih_t"][l]) + mm(hidden[l], params["whh_t"][l])
             + params["b_lstm"][l])
        i_g = jax.nn.sigmoid(z[:, :H])
        f_g = jax.nn.sigmoid(z[:, H:2 * H])
        g_g = jnp.tanh(z[:, 2 * H:3 * H])
        o_g = jax.nn.sigmoid(z[:, 3 * H:])
        c_l = f_g * cell[l] + i_g * g_g
        h_l = o_g * jnp.tanh(c_l)
        new_h.append(h_l)
        new_c.append(c_l)
        layer_in = h_l
    out = mm(layer_in, params["wfc_t"]) + params["bfc"]
    return out, jnp.stack(new_h), jnp.stack(new_c)


def decoder_decode_ref(tokens, hidden, cell, params, mxu_dtype=jnp.float32):
    outs, h, c = [], hidden, cell
    for t in range(tokens.shape[0]):
        o, h, c = decoder_step_ref(tokens[t], h, c, params, mxu_dtype)
        outs.append(o)
    return jnp.stack(outs), h, c


# ----------------------------- main ----------------------------------------

if __name__ == "__main__":
    input_size = 64     # vocab
    embed_dims = 32
    hidden_size = 32
    num_layers = 2
    batch = 8
    T = 4

    key = jax.random.PRNGKey(0)
    ks = jax.random.split(key, 18)
    stdv = 1.0 / np.sqrt(hidden_size)

    def u(k, shape):
        return jax.random.uniform(k, shape, jnp.float32, -stdv, stdv)

    # Parameters (deterministic). LSTM weights stored pre-transposed: (in, 4H),
    # gate order i,f,g,o; b_ih + b_hh folded into a single bias (as real
    # PyTorch weights must be when imported).
    wih_t, whh_t, b_lstm = [], [], []
    for l in range(num_layers):
        in_dim = embed_dims if l == 0 else hidden_size
        wih_t.append(u(ks[2 * l], (in_dim, 4 * hidden_size)))
        whh_t.append(u(ks[2 * l + 1], (hidden_size, 4 * hidden_size)))
        b_lstm.append(u(ks[8 + l], (1, 4 * hidden_size)))

    params = {
        "embed": jax.random.normal(ks[10], (input_size, embed_dims), jnp.float32),
        "wih_t": wih_t,
        "whh_t": whh_t,
        "b_lstm": b_lstm,
        "wfc_t": u(ks[11], (hidden_size, input_size)),
        "bfc": u(ks[12], (1, input_size)),
    }

    x_tokens = jax.random.randint(ks[13], (batch,), 0, input_size, jnp.int32)
    tokens_T = jax.random.randint(ks[16], (T, batch), 0, input_size, jnp.int32)
    hidden0 = jax.random.normal(ks[14], (num_layers, batch, hidden_size), jnp.float32)
    cell0 = jax.random.normal(ks[15], (num_layers, batch, hidden_size), jnp.float32)

    kp = pack_params(params)

    # ---- single step: exact Decoder.forward semantics ----
    fwd = jax.jit(decoder_forward)
    out, h_new, c_new = fwd(x_tokens, hidden0, cell0, kp)
    jax.block_until_ready((out, h_new, c_new))

    out_m, h_m, c_m = decoder_step_ref(x_tokens, hidden0, cell0, params,
                                       mxu_dtype=jnp.bfloat16)
    np.testing.assert_allclose(np.asarray(out), np.asarray(out_m), atol=5e-3, rtol=5e-3)
    np.testing.assert_allclose(np.asarray(h_new), np.asarray(h_m), atol=5e-3, rtol=5e-3)
    np.testing.assert_allclose(np.asarray(c_new), np.asarray(c_m), atol=5e-3, rtol=5e-3)

    out_r, h_r, c_r = decoder_step_ref(x_tokens, hidden0, cell0, params)
    np.testing.assert_allclose(np.asarray(out), np.asarray(out_r), atol=1e-1, rtol=1e-1)
    np.testing.assert_allclose(np.asarray(h_new), np.asarray(h_r), atol=1e-1, rtol=1e-1)
    np.testing.assert_allclose(np.asarray(c_new), np.asarray(c_r), atol=1e-1, rtol=1e-1)

    # ---- fused multi-step decode (time loop in the grid, resident weights) ----
    dec = jax.jit(decoder_decode)
    outs, hT, cT = dec(tokens_T, hidden0, cell0, kp)
    jax.block_until_ready((outs, hT, cT))

    outs_m, hT_m, cT_m = decoder_decode_ref(tokens_T, hidden0, cell0, params,
                                            mxu_dtype=jnp.bfloat16)
    np.testing.assert_allclose(np.asarray(outs), np.asarray(outs_m), atol=5e-3, rtol=5e-3)
    np.testing.assert_allclose(np.asarray(hT), np.asarray(hT_m), atol=5e-3, rtol=5e-3)
    np.testing.assert_allclose(np.asarray(cT), np.asarray(cT_m), atol=5e-3, rtol=5e-3)

    print("KERNEL_OK")
</pallas_src>

<mosaic_0001>
module attributes {stable_mosaic.version = 11 : i64} {
  func.func @kernel(%arg0: i32, %arg1: memref<1x8xi32, #tpu.memory_space<smem>>, %arg2: memref<8x128xf32, #tpu.memory_space<vmem>>, %arg3: memref<64x32xbf16, #tpu.memory_space<vmem>>, %arg4: memref<2x64x128xbf16, #tpu.memory_space<vmem>>, %arg5: memref<2x1x128xf32, #tpu.memory_space<vmem>>, %arg6: memref<32x128xbf16, #tpu.memory_space<vmem>>, %arg7: memref<1x128xf32, #tpu.memory_space<vmem>>, %arg8: memref<1x8x128xf32, #tpu.memory_space<vmem>>, %arg9: memref<8x128xf32, #tpu.memory_space<vmem>>) attributes {dimension_semantics = [#tpu.dimension_semantics<arbitrary>], iteration_bounds = array<i64: 1>, scalar_prefetch = 1 : i64, scratch_operands = 0 : i64, tpu.core_type = #tpu.core_type<tc>, window_params = [{pipeline_mode = #tpu.pipeline_mode<synchronous>, transform_indices = @transform_0, window_bounds = array<i64: 8, 128>}, {pipeline_mode = #tpu.pipeline_mode<synchronous>, transform_indices = @transform_1, window_bounds = array<i64: 64, 32>}, {pipeline_mode = #tpu.pipeline_mode<synchronous>, transform_indices = @transform_2, window_bounds = array<i64: 2, 64, 128>}, {pipeline_mode = #tpu.pipeline_mode<synchronous>, transform_indices = @transform_3, window_bounds = array<i64: 2, 1, 128>}, {pipeline_mode = #tpu.pipeline_mode<synchronous>, transform_indices = @transform_4, window_bounds = array<i64: 32, 128>}, {pipeline_mode = #tpu.pipeline_mode<synchronous>, transform_indices = @transform_5, window_bounds = array<i64: 1, 128>}, {transform_indices = @transform_6, window_bounds = array<i64: 1, 8, 128>}, {pipeline_mode = #tpu.pipeline_mode<synchronous>, transform_indices = @transform_7, window_bounds = array<i64: 8, 128>}]} {
    %c0_i32 = arith.constant 0 : i32
    %0 = arith.cmpi eq, %arg0, %c0_i32 : i32
    %1 = arith.extui %0 : i1 to i32
    %c0_i32_0 = arith.constant 0 : i32
    %2 = arith.cmpi ne, %1, %c0_i32_0 : i32
    scf.if %2 {
      %c0_37 = arith.constant 0 : index
      %c0_38 = arith.constant 0 : index
      %146 = vector.load %arg2[%c0_37, %c0_38] : memref<8x128xf32, #tpu.memory_space<vmem>>, vector<8x128xf32>
      %c0_39 = arith.constant 0 : index
      %c0_40 = arith.constant 0 : index
      %147 = vector.load %arg9[%c0_39, %c0_40] : memref<8x128xf32, #tpu.memory_space<vmem>>, vector<8x128xf32>
      tpu.vector_store %arg9[%c0_39, %c0_40], %146 {strides = array<i32>} : memref<8x128xf32, #tpu.memory_space<vmem>>, vector<8x128xf32>,
    } else {
    }
    %c0 = arith.constant 0 : index
    %c0_1 = arith.constant 0 : index
    %3 = vector.load %arg9[%c0, %c0_1] : memref<8x128xf32, #tpu.memory_space<vmem>>, vector<8x128xf32>
    %4 = tpu.iota {dimensions = array<i32: 1>} : vector<8x64xi32>
    %5 = tpu.iota {dimensions = array<i32: 0>} : vector<8x64xi32>
    %c0_i32_2 = arith.constant 0 : i32
    %6 = vector.broadcast %c0_i32_2 : i32 to vector<8x64xi32>
    %c0_i32_3 = arith.constant 0 : i32
    %7 = vector.broadcast %c0_i32_3 : i32 to vector<8x64xi32>
    %8 = arith.cmpi eq, %5, %7 : vector<8x64xi32>
    %9 = arith.index_cast %arg0 : i32 to index
    %c0_4 = arith.constant 0 : index
    %10 = memref.load %arg1[%9, %c0_4] : memref<1x8xi32, #tpu.memory_space<smem>>
    %11 = vector.broadcast %10 : i32 to vector<8x64xi32>
    %12 = arith.select %8, %11, %6 : vector<8x64xi1>, vector<8x64xi32>
    %c1_i32 = arith.constant 1 : i32
    %13 = vector.broadcast %c1_i32 : i32 to vector<8x64xi32>
    %14 = arith.cmpi eq, %5, %13 : vector<8x64xi32>
    %15 = arith.index_cast %arg0 : i32 to index
    %c1 = arith.constant 1 : index
    %16 = memref.load %arg1[%15, %c1] : memref<1x8xi32, #tpu.memory_space<smem>>
    %17 = vector.broadcast %16 : i32 to vector<8x64xi32>
    %18 = arith.select %14, %17, %12 : vector<8x64xi1>, vector<8x64xi32>
    %c2_i32 = arith.constant 2 : i32
    %19 = vector.broadcast %c2_i32 : i32 to vector<8x64xi32>
    %20 = arith.cmpi eq, %5, %19 : vector<8x64xi32>
    %21 = arith.index_cast %arg0 : i32 to index
    %c2 = arith.constant 2 : index
    %22 = memref.load %arg1[%21, %c2] : memref<1x8xi32, #tpu.memory_space<smem>>
    %23 = vector.broadcast %22 : i32 to vector<8x64xi32>
    %24 = arith.select %20, %23, %18 : vector<8x64xi1>, vector<8x64xi32>
    %c3_i32 = arith.constant 3 : i32
    %25 = vector.broadcast %c3_i32 : i32 to vector<8x64xi32>
    %26 = arith.cmpi eq, %5, %25 : vector<8x64xi32>
    %27 = arith.index_cast %arg0 : i32 to index
    %c3 = arith.constant 3 : index
    %28 = memref.load %arg1[%27, %c3] : memref<1x8xi32, #tpu.memory_space<smem>>
    %29 = vector.broadcast %28 : i32 to vector<8x64xi32>
    %30 = arith.select %26, %29, %24 : vector<8x64xi1>, vector<8x64xi32>
    %c4_i32 = arith.constant 4 : i32
    %31 = vector.broadcast %c4_i32 : i32 to vector<8x64xi32>
    %32 = arith.cmpi eq, %5, %31 : vector<8x64xi32>
    %33 = arith.index_cast %arg0 : i32 to index
    %c4 = arith.constant 4 : index
    %34 = memref.load %arg1[%33, %c4] : memref<1x8xi32, #tpu.memory_space<smem>>
    %35 = vector.broadcast %34 : i32 to vector<8x64xi32>
    %36 = arith.select %32, %35, %30 : vector<8x64xi1>, vector<8x64xi32>
    %c5_i32 = arith.constant 5 : i32
    %37 = vector.broadcast %c5_i32 : i32 to vector<8x64xi32>
    %38 = arith.cmpi eq, %5, %37 : vector<8x64xi32>
    %39 = arith.index_cast %arg0 : i32 to index
    %c5 = arith.constant 5 : index
    %40 = memref.load %arg1[%39, %c5] : memref<1x8xi32, #tpu.memory_space<smem>>
    %41 = vector.broadcast %40 : i32 to vector<8x64xi32>
    %42 = arith.select %38, %41, %36 : vector<8x64xi1>, vector<8x64xi32>
    %c6_i32 = arith.constant 6 : i32
    %43 = vector.broadcast %c6_i32 : i32 to vector<8x64xi32>
    %44 = arith.cmpi eq, %5, %43 : vector<8x64xi32>
    %45 = arith.index_cast %arg0 : i32 to index
    %c6 = arith.constant 6 : index
    %46 = memref.load %arg1[%45, %c6] : memref<1x8xi32, #tpu.memory_space<smem>>
    %47 = vector.broadcast %46 : i32 to vector<8x64xi32>
    %48 = arith.select %44, %47, %42 : vector<8x64xi1>, vector<8x64xi32>
    %c7_i32 = arith.constant 7 : i32
    %49 = vector.broadcast %c7_i32 : i32 to vector<8x64xi32>
    %50 = arith.cmpi eq, %5, %49 : vector<8x64xi32>
    %51 = arith.index_cast %arg0 : i32 to index
    %c7 = arith.constant 7 : index
    %52 = memref.load %arg1[%51, %c7] : memref<1x8xi32, #tpu.memory_space<smem>>
    %53 = vector.broadcast %52 : i32 to vector<8x64xi32>
    %54 = arith.select %50, %53, %48 : vector<8x64xi1>, vector<8x64xi32>
    %55 = arith.cmpi eq, %4, %54 : vector<8x64xi32>
    %56 = arith.extui %55 : vector<8x64xi1> to vector<8x64xi32>
    %57 = arith.sitofp %56 : vector<8x64xi32> to vector<8x64xf32>
    %58 = arith.truncf %57 : vector<8x64xf32> to vector<8x64xbf16>
    %c0_5 = arith.constant 0 : index
    %c0_6 = arith.constant 0 : index
    %59 = vector.load %arg3[%c0_5, %c0_6] : memref<64x32xbf16, #tpu.memory_space<vmem>>, vector<64x32xbf16>
    %cst = arith.constant dense<0.000000e+00> : vector<8x32xf32>
    %60 = tpu.matmul %58, %59, %cst {dimension_numbers = #tpu.dot_dimension_numbers<[1], [0], [0], [1], [0, 0, 1, 1], [], []>} : vector<8x64xbf16>, vector<64x32xbf16>, vector<8x32xf32> -> vector<8x32xf32>
    %61 = vector.extract_strided_slice %3 {offsets = [0, 0], sizes = [8, 32], strides = [1, 1]} : vector<8x128xf32> to vector<8x32xf32>
    %62 = vector.extract_strided_slice %3 {offsets = [0, 64], sizes = [8, 32], strides = [1, 1]} : vector<8x128xf32> to vector<8x32xf32>
    %63 = arith.truncf %60 : vector<8x32xf32> to vector<8x32xbf16>
    %64 = arith.truncf %61 : vector<8x32xf32> to vector<8x32xbf16>
    %65 = tpu.concatenate %63, %64 in 1 : vector<8x32xbf16>, vector<8x32xbf16> -> vector<8x64xbf16>
    %c0_7 = arith.constant 0 : index
    %c0_8 = arith.constant 0 : index
    %c0_9 = arith.constant 0 : index
    %66 = vector.load %arg4[%c0_7, %c0_8, %c0_9] : memref<2x64x128xbf16, #tpu.memory_space<vmem>>, vector<1x64x128xbf16>
    %67 = vector.shape_cast %66 : vector<1x64x128xbf16> to vector<64x128xbf16>
    %cst_10 = arith.constant dense<0.000000e+00> : vector<8x128xf32>
    %68 = tpu.matmul %65, %67, %cst_10 {dimension_numbers = #tpu.dot_dimension_numbers<[1], [0], [0], [1], [0, 0, 1, 1], [], []>} : vector<8x64xbf16>, vector<64x128xbf16>, vector<8x128xf32> -> vector<8x128xf32>
    %c0_11 = arith.constant 0 : index
    %c0_12 = arith.constant 0 : index
    %c0_13 = arith.constant 0 : index
    %69 = vector.load %arg5[%c0_11, %c0_12, %c0_13] : memref<2x1x128xf32, #tpu.memory_space<vmem>>, vector<1x1x128xf32>
    %70 = vector.shape_cast %69 : vector<1x1x128xf32> to vector<1x128xf32>
    %71 = vector.broadcast %70 : vector<1x128xf32> to vector<8x128xf32>
    %72 = arith.addf %68, %71 : vector<8x128xf32>
    %73 = vector.extract_strided_slice %72 {offsets = [0, 0], sizes = [8, 32], strides = [1, 1]} : vector<8x128xf32> to vector<8x32xf32>
    %74 = arith.negf %73 : vector<8x32xf32>
    %75 = math.exp %74 : vector<8x32xf32>
    %cst_14 = arith.constant 1.000000e+00 : f32
    %76 = vector.broadcast %cst_14 : f32 to vector<8x32xf32>
    %77 = arith.addf %76, %75 : vector<8x32xf32>
    %78 = arith.divf %76, %77 : vector<8x32xf32>
    %79 = vector.extract_strided_slice %72 {offsets = [0, 32], sizes = [8, 32], strides = [1, 1]} : vector<8x128xf32> to vector<8x32xf32>
    %80 = arith.negf %79 : vector<8x32xf32>
    %81 = math.exp %80 : vector<8x32xf32>
    %cst_15 = arith.constant 1.000000e+00 : f32
    %82 = vector.broadcast %cst_15 : f32 to vector<8x32xf32>
    %83 = arith.addf %82, %81 : vector<8x32xf32>
    %84 = arith.divf %82, %83 : vector<8x32xf32>
    %85 = vector.extract_strided_slice %72 {offsets = [0, 64], sizes = [8, 32], strides = [1, 1]} : vector<8x128xf32> to vector<8x32xf32>
    %86 = math.tanh %85 : vector<8x32xf32>
    %87 = vector.extract_strided_slice %72 {offsets = [0, 96], sizes = [8, 32], strides = [1, 1]} : vector<8x128xf32> to vector<8x32xf32>
    %88 = arith.negf %87 : vector<8x32xf32>
    %89 = math.exp %88 : vector<8x32xf32>
    %cst_16 = arith.constant 1.000000e+00 : f32
    %90 = vector.broadcast %cst_16 : f32 to vector<8x32xf32>
    %91 = arith.addf %90, %89 : vector<8x32xf32>
    %92 = arith.divf %90, %91 : vector<8x32xf32>
    %93 = arith.mulf %84, %62 : vector<8x32xf32>
    %94 = arith.mulf %78, %86 : vector<8x32xf32>
    %95 = arith.addf %93, %94 : vector<8x32xf32>
    %96 = math.tanh %95 : vector<8x32xf32>
    %97 = arith.mulf %92, %96 : vector<8x32xf32>
    %98 = vector.extract_strided_slice %3 {offsets = [0, 32], sizes = [8, 32], strides = [1, 1]} : vector<8x128xf32> to vector<8x32xf32>
    %99 = vector.extract_strided_slice %3 {offsets = [0, 96], sizes = [8, 32], strides = [1, 1]} : vector<8x128xf32> to vector<8x32xf32>
    %100 = arith.truncf %97 : vector<8x32xf32> to vector<8x32xbf16>
    %101 = arith.truncf %98 : vector<8x32xf32> to vector<8x32xbf16>
    %102 = tpu.concatenate %100, %101 in 1 : vector<8x32xbf16>, vector<8x32xbf16> -> vector<8x64xbf16>
    %c1_17 = arith.constant 1 : index
    %c0_18 = arith.constant 0 : index
    %c0_19 = arith.constant 0 : index
    %103 = vector.load %arg4[%c1_17, %c0_18, %c0_19] : memref<2x64x128xbf16, #tpu.memory_space<vmem>>, vector<1x64x128xbf16>
    %104 = vector.shape_cast %103 : vector<1x64x128xbf16> to vector<64x128xbf16>
    %cst_20 = arith.constant dense<0.000000e+00> : vector<8x128xf32>
    %105 = tpu.matmul %102, %104, %cst_20 {dimension_numbers = #tpu.dot_dimension_numbers<[1], [0], [0], [1], [0, 0, 1, 1], [], []>} : vector<8x64xbf16>, vector<64x128xbf16>, vector<8x128xf32> -> vector<8x128xf32>
    %c1_21 = arith.constant 1 : index
    %c0_22 = arith.constant 0 : index
    %c0_23 = arith.constant 0 : index
    %106 = vector.load %arg5[%c1_21, %c0_22, %c0_23] : memref<2x1x128xf32, #tpu.memory_space<vmem>>, vector<1x1x128xf32>
    %107 = vector.shape_cast %106 : vector<1x1x128xf32> to vector<1x128xf32>
    %108 = vector.broadcast %107 : vector<1x128xf32> to vector<8x128xf32>
    %109 = arith.addf %105, %108 : vector<8x128xf32>
    %110 = vector.extract_strided_slice %109 {offsets = [0, 0], sizes = [8, 32], strides = [1, 1]} : vector<8x128xf32> to vector<8x32xf32>
    %111 = arith.negf %110 : vector<8x32xf32>
    %112 = math.exp %111 : vector<8x32xf32>
    %cst_24 = arith.constant 1.000000e+00 : f32
    %113 = vector.broadcast %cst_24 : f32 to vector<8x32xf32>
    %114 = arith.addf %113, %112 : vector<8x32xf32>
    %115 = arith.divf %113, %114 : vector<8x32xf32>
    %116 = vector.extract_strided_slice %109 {offsets = [0, 32], sizes = [8, 32], strides = [1, 1]} : vector<8x128xf32> to vector<8x32xf32>
    %117 = arith.negf %116 : vector<8x32xf32>
    %118 = math.exp %117 : vector<8x32xf32>
    %cst_25 = arith.constant 1.000000e+00 : f32
    %119 = vector.broadcast %cst_25 : f32 to vector<8x32xf32>
    %120 = arith.addf %119, %118 : vector<8x32xf32>
    %121 = arith.divf %119, %120 : vector<8x32xf32>
    %122 = vector.extract_strided_slice %109 {offsets = [0, 64], sizes = [8, 32], strides = [1, 1]} : vector<8x128xf32> to vector<8x32xf32>
    %123 = math.tanh %122 : vector<8x32xf32>
    %124 = vector.extract_strided_slice %109 {offsets = [0, 96], sizes = [8, 32], strides = [1, 1]} : vector<8x128xf32> to vector<8x32xf32>
    %125 = arith.negf %124 : vector<8x32xf32>
    %126 = math.exp %125 : vector<8x32xf32>
    %cst_26 = arith.constant 1.000000e+00 : f32
    %127 = vector.broadcast %cst_26 : f32 to vector<8x32xf32>
    %128 = arith.addf %127, %126 : vector<8x32xf32>
    %129 = arith.divf %127, %128 : vector<8x32xf32>
    %130 = arith.mulf %121, %99 : vector<8x32xf32>
    %131 = arith.mulf %115, %123 : vector<8x32xf32>
    %132 = arith.addf %130, %131 : vector<8x32xf32>
    %133 = math.tanh %132 : vector<8x32xf32>
    %134 = arith.mulf %129, %133 : vector<8x32xf32>
    %135 = tpu.concatenate %97, %134, %95, %132 in 1 : vector<8x32xf32>, vector<8x32xf32>, vector<8x32xf32>, vector<8x32xf32> -> vector<8x128xf32>
    %c0_27 = arith.constant 0 : index
    %c0_28 = arith.constant 0 : index
    %136 = vector.load %arg9[%c0_27, %c0_28] : memref<8x128xf32, #tpu.memory_space<vmem>>, vector<8x128xf32>
    tpu.vector_store %arg9[%c0_27, %c0_28], %135 {strides = array<i32>} : memref<8x128xf32, #tpu.memory_space<vmem>>, vector<8x128xf32>,
    %137 = arith.truncf %134 : vector<8x32xf32> to vector<8x32xbf16>
    %c0_29 = arith.constant 0 : index
    %c0_30 = arith.constant 0 : index
    %138 = vector.load %arg6[%c0_29, %c0_30] : memref<32x128xbf16, #tpu.memory_space<vmem>>, vector<32x128xbf16>
    %cst_31 = arith.constant dense<0.000000e+00> : vector<8x128xf32>
    %139 = tpu.matmul %137, %138, %cst_31 {dimension_numbers = #tpu.dot_dimension_numbers<[1], [0], [0], [1], [0, 0, 1, 1], [], []>} : vector<8x32xbf16>, vector<32x128xbf16>, vector<8x128xf32> -> vector<8x128xf32>
    %c0_32 = arith.constant 0 : index
    %c0_33 = arith.constant 0 : index
    %140 = vector.load %arg7[%c0_32, %c0_33] : memref<1x128xf32, #tpu.memory_space<vmem>>, vector<1x128xf32>
    %141 = vector.broadcast %140 : vector<1x128xf32> to vector<8x128xf32>
    %142 = arith.addf %139, %141 : vector<8x128xf32>
    %c0_34 = arith.constant 0 : index
    %c0_35 = arith.constant 0 : index
    %c0_36 = arith.constant 0 : index
    %143 = vector.load %arg8[%c0_34, %c0_35, %c0_36] : memref<1x8x128xf32, #tpu.memory_space<vmem>>, vector<1x8x128xf32>
    %144 = vector.shape_cast %143 : vector<1x8x128xf32> to vector<8x128xf32>
    %145 = vector.shape_cast %142 : vector<8x128xf32> to vector<1x8x128xf32>
    tpu.vector_store %arg8[%c0_34, %c0_35, %c0_36], %145 {strides = array<i32>} : memref<1x8x128xf32, #tpu.memory_space<vmem>>, vector<1x8x128xf32>,
    return
  }
  func.func @transform_0(%arg0: i32, %arg1: memref<1x8xi32, #tpu.memory_space<smem>>) -> (i32, i32) {
    %c0_i32 = arith.constant 0 : i32
    %c0_i32_0 = arith.constant 0 : i32
    %c0_i32_1 = arith.constant 0 : i32
    return %c0_i32, %c0_i32_0 : i32, i32
  }
  func.func @transform_1(%arg0: i32, %arg1: memref<1x8xi32, #tpu.memory_space<smem>>) -> (i32, i32) {
    %c0_i32 = arith.constant 0 : i32
    %c0_i32_0 = arith.constant 0 : i32
    %c0_i32_1 = arith.constant 0 : i32
    return %c0_i32, %c0_i32_0 : i32, i32
  }
  func.func @transform_2(%arg0: i32, %arg1: memref<1x8xi32, #tpu.memory_space<smem>>) -> (i32, i32, i32) {
    %c0_i32 = arith.constant 0 : i32
    %c0_i32_0 = arith.constant 0 : i32
    %c0_i32_1 = arith.constant 0 : i32
    %c0_i32_2 = arith.constant 0 : i32
    return %c0_i32, %c0_i32_0, %c0_i32_1 : i32, i32, i32
  }
  func.func @transform_3(%arg0: i32, %arg1: memref<1x8xi32, #tpu.memory_space<smem>>) -> (i32, i32, i32) {
    %c0_i32 = arith.constant 0 : i32
    %c0_i32_0 = arith.constant 0 : i32
    %c0_i32_1 = arith.constant 0 : i32
    %c0_i32_2 = arith.constant 0 : i32
    return %c0_i32, %c0_i32_0, %c0_i32_1 : i32, i32, i32
  }
  func.func @transform_4(%arg0: i32, %arg1: memref<1x8xi32, #tpu.memory_space<smem>>) -> (i32, i32) {
    %c0_i32 = arith.constant 0 : i32
    %c0_i32_0 = arith.constant 0 : i32
    %c0_i32_1 = arith.constant 0 : i32
    return %c0_i32, %c0_i32_0 : i32, i32
  }
  func.func @transform_5(%arg0: i32, %arg1: memref<1x8xi32, #tpu.memory_space<smem>>) -> (i32, i32) {
    %c0_i32 = arith.constant 0 : i32
    %c0_i32_0 = arith.constant 0 : i32
    %c0_i32_1 = arith.constant 0 : i32
    return %c0_i32, %c0_i32_0 : i32, i32
  }
  func.func @transform_6(%arg0: i32, %arg1: memref<1x8xi32, #tpu.memory_space<smem>>) -> (i32, i32, i32) {
    %c0_i32 = arith.constant 0 : i32
    %c0_i32_0 = arith.constant 0 : i32
    %c0_i32_1 = arith.constant 0 : i32
    return %arg0, %c0_i32, %c0_i32_0 : i32, i32, i32
  }
  func.func @transform_7(%arg0: i32, %arg1: memref<1x8xi32, #tpu.memory_space<smem>>) -> (i32, i32) {
    %c0_i32 = arith.constant 0 : i32
    %c0_i32_0 = arith.constant 0 : i32
    %c0_i32_1 = arith.constant 0 : i32
    return %c0_i32, %c0_i32_0 : i32, i32
  }
}

</mosaic_0001>

<llo_original>
// kernel: decoder_forward.1
$region0: #{decoder_forward.1}
  #allocation0 [shape = 'u32[]', space=smem, size = 0x4, offset = 0x4, fixed_abs, tag = 'smem constant byte address 0x4 - core index']
  #allocation1 [shape = 'u32[144,128]{1,0:T(1,128)}', space=vmem, size = 0x12000, scoped, tag = 'internal scratch']
  #allocation2 [shape = 's32[1]{0}', space=sflag, size = 0x4, scoped, tag = 'scoped memory for decoder_forward.1']
  #allocation3 [shape = 'u8[512]{0}', space=smem, size = 0x200, scoped, tag = 'prefetched SMEM operand 0']
  %s0 = inlined_call_operand.vmem [shape: s32[1,8], index: 0, kind: input, shape index: {}]
  %s1 = inlined_call_operand.vmem [shape: f32[8,128], index: 1, kind: input, shape index: {}]
  %s2 = inlined_call_operand.vmem [shape: bf16[64,32], index: 2, kind: input, shape index: {}]
  %s3 = inlined_call_operand.vmem [shape: bf16[2,64,128], index: 3, kind: input, shape index: {}]
  %s4 = inlined_call_operand.vmem [shape: f32[2,1,128], index: 4, kind: input, shape index: {}]
  %s5 = inlined_call_operand.vmem [shape: bf16[32,128], index: 5, kind: input, shape index: {}]
  %s6 = inlined_call_operand.vmem [shape: f32[1,128], index: 6, kind: input, shape index: {}]
  %s7 = inlined_call_operand.vmem [shape: f32[1,8,128], index: 7, kind: output, shape index: {0}]
  %s8 = inlined_call_operand.vmem [shape: f32[8,128], index: 8, kind: output, shape index: {1}]
  %9 = xla_tuple %s7, %s8
  %s10 = sld [smem:[#allocation0]]
  $region46: #{decoder_forward.1} parent=0
    _
  %s12 = ssub.s32 1, %s10
  %s13 = scalar_select 0, %s12, %s10
  %s14 = sshll.u32 %s0, 4
  %s15 = int_to_ptr.vmem [resolvable:$true] %s14
  %17 = dma.vmem_to_smem %s15, 16, [#allocation3], [#allocation2]
  %18 = dma.done [#allocation2], 16
  %19 = sfence
  // Predicated region
  $region2: #{decoder_forward.1} parent=0 // pred_check
    _
  $region3: #{decoder_forward.1} parent=0 // pred_check_branch
    %21 = sbr.rel (0) target = $region5
  $region4: #{decoder_forward.1} parent=0 // pred_region
    _
  $region5: #{decoder_forward.1} parent=0 // pred_fallthru
    _
  // Predicated region
  $region6: #{decoder_forward.1} parent=0 // pred_check
    _
  $region7: #{decoder_forward.1} parent=0 // pred_check_branch
    %23 = sbr.rel (0) target = $region9
  $region8: #{decoder_forward.1} parent=0 // pred_region
    _
  $region9: #{decoder_forward.1} parent=0 // pred_fallthru
    _
  // Predicated region
  $region10: #{decoder_forward.1} parent=0 // pred_check
    _
  $region11: #{decoder_forward.1} parent=0 // pred_check_branch
    %25 = sbr.rel (0) target = $region13
  $region12: #{decoder_forward.1} parent=0 // pred_region
    _
  $region13: #{decoder_forward.1} parent=0 // pred_fallthru
    _
  // Predicated region
  $region14: #{decoder_forward.1} parent=0 // pred_check
    _
  $region15: #{decoder_forward.1} parent=0 // pred_check_branch
    %27 = sbr.rel (0) target = $region17
  $region16: #{decoder_forward.1} parent=0 // pred_region
    _
  $region17: #{decoder_forward.1} parent=0 // pred_fallthru
    _
  // Predicated region
  $region18: #{decoder_forward.1} parent=0 // pred_check
    _
  $region19: #{decoder_forward.1} parent=0 // pred_check_branch
    %29 = sbr.rel (0) target = $region21
  $region20: #{decoder_forward.1} parent=0 // pred_region
    _
  $region21: #{decoder_forward.1} parent=0 // pred_fallthru
    _
  // Predicated region
  $region22: #{decoder_forward.1} parent=0 // pred_check
    _
  $region23: #{decoder_forward.1} parent=0 // pred_check_branch
    %31 = sbr.rel (0) target = $region25
  $region24: #{decoder_forward.1} parent=0 // pred_region
    _
  $region25: #{decoder_forward.1} parent=0 // pred_fallthru
    _
  %p33 = scmp.eq.s32.totalorder 0, 0
  // Predicated region
  $region26: #{decoder_forward.1} parent=0 // pred_check
    %p34 = pneg %p33
  $region27: #{decoder_forward.1} parent=0 // pred_check_branch
    %36 = sbr.rel (%p34) target = $region29
  $region28: #{decoder_forward.1} parent=0 // pred_region
    %v37 = vld [vmem:[%s1] sm:$0xff]
    %38 = vst [vmem:[%s8] sm:$0xff] %v37
  $region29: #{decoder_forward.1} parent=0 // pred_fallthru
    _
  %v39 = vld [vmem:[%s8] sm:$0xff]
  %v40 = vlaneseq
  %v41 = vand.u32 %v40, 127
  %v42 = vlaneseq
  %v43 = vshrl.u32 %v42, 7
  %vm44 = vcmp.eq.s32.totalorder %v43, 0
  %s45 = smul.u32 0, 128
  %s46 = sld [smem:[#allocation3 + %s45]]
  %v47 = vstv %s46
  %v48 = vsel %vm44, %v47, 0
  %vm49 = vcmp.eq.s32.totalorder %v43, 1
  %s50 = sadd.s32 %s45, 1
  %s51 = sld [smem:[#allocation3 + %s50]]
  %v52 = vstv %s51
  %v53 = vsel %vm49, %v52, %v48
  %vm54 = vcmp.eq.s32.totalorder %v43, 2
  %s55 = sadd.s32 %s45, 2
  %s56 = sld [smem:[#allocation3 + %s55]]
  %v57 = vstv %s56
  %v58 = vsel %vm54, %v57, %v53
  %vm59 = vcmp.eq.s32.totalorder %v43, 3
  %s60 = sadd.s32 %s45, 3
  %s61 = sld [smem:[#allocation3 + %s60]]
  %v62 = vstv %s61
  %v63 = vsel %vm59, %v62, %v58
  %vm64 = vcmp.eq.s32.totalorder %v43, 4
  %s65 = sadd.s32 %s45, 4
  %s66 = sld [smem:[#allocation3 + %s65]]
  %v67 = vstv %s66
  %v68 = vsel %vm64, %v67, %v63
  %vm69 = vcmp.eq.s32.totalorder %v43, 5
  %s70 = sadd.s32 %s45, 5
  %s71 = sld [smem:[#allocation3 + %s70]]
  %v72 = vstv %s71
  %v73 = vsel %vm69, %v72, %v68
  %vm74 = vcmp.eq.s32.totalorder %v43, 6
  %s75 = sadd.s32 %s45, 6
  %s76 = sld [smem:[#allocation3 + %s75]]
  %v77 = vstv %s76
  %v78 = vsel %vm74, %v77, %v73
  %vm79 = vcmp.eq.s32.totalorder %v43, 7
  %s80 = sadd.s32 %s45, 7
  %s81 = sld [smem:[#allocation3 + %s80]]
  %v82 = vstv %s81
  %v83 = vsel %vm79, %v82, %v78
  %vm84 = vcmp.eq.s32.totalorder %v41, %v83
  %v85 = vsel %vm84, 1, 0
  %v86 = vcvt.s32.f32 %v85
  %v87 = vpack.c.bf16 %v86, %v86
  %v88 = vld [vmem:[%s2] sm:$0xf]
  %v89 = vld [vmem:[%s2 + $0x4] sm:$0xf]
  %v90 = vld [vmem:[%s2 + $0x8] sm:$0xf]
  %v91 = vld [vmem:[%s2 + $0xc] sm:$0xf]
  %v92 = vld [vmem:[%s2 + $0x10] sm:$0xf]
  %v93 = vld [vmem:[%s2 + $0x14] sm:$0xf]
  %v94 = vld [vmem:[%s2 + $0x18] sm:$0xf]
  %v95 = vld [vmem:[%s2 + $0x1c] sm:$0xf]
  %v104 = vunpack.c.l.b16 %v88
  %v105 = vunpack.c.l.b16 %v89
  %v106 = vunpack.c.l.b16 %v90
  %v107 = vunpack.c.l.b16 %v91
  %v108 = vunpack.c.l.b16 %v92
  %v109 = vunpack.c.l.b16 %v93
  %v110 = vunpack.c.l.b16 %v94
  %v111 = vunpack.c.l.b16 %v95
  %v112 = vpack.c.b16 %v105, %v104
  %v113 = vpack.c.b16 %v107, %v106
  %v114 = vpack.c.b16 %v109, %v108
  %v115 = vpack.c.b16 %v111, %v110
  %vm120 = vcmask 523264
  %v122 = vsel %vm120, %v87, 0
  %124 = vmatprep.subr.bf16.mxu0 0
  %125 = vmatpush1.bf16.msra.mxu0 %v112
  %126 = vmatprep.subr.bf16.mxu0 0
  %127 = vmatpush1.bf16.msra.mxu0 %v113
  %128 = vmatprep.subr.bf16.mxu0 0
  %129 = vmatpush1.bf16.msra.mxu0 %v114
  %130 = vmatprep.subr.bf16.mxu0 0
  %131 = vmatpush1.bf16.msra.mxu0 %v115
  %132 = vmatprep.subr.bf16.mxu0 0
  %133 = vmatpush1.bf16.msra.mxu0 0
  %134 = vmatprep.subr.bf16.mxu0 0
  %135 = vmatpush1.bf16.msra.mxu0 0
  %136 = vmatprep.subr.bf16.mxu0 0
  %137 = vmatpush1.bf16.msra.mxu0 0
  %138 = vmatprep.subr.bf16.mxu0 0
  %139 = vmatpush1.bf16.msra.mxu0 0
  %140 = vmatprep.subr.bf16.mxu0 0
  %141 = vmatpush1.bf16.msra.mxu0 0
  %142 = vmatprep.subr.bf16.mxu0 0
  %143 = vmatpush1.bf16.msra.mxu0 0
  %144 = vmatprep.subr.bf16.mxu0 0
  %145 = vmatpush1.bf16.msra.mxu0 0
  %146 = vmatprep.subr.bf16.mxu0 0
  %147 = vmatpush1.bf16.msra.mxu0 0
  %148 = vmatprep.subr.bf16.mxu0 0
  %149 = vmatpush1.bf16.msra.mxu0 0
  %150 = vmatprep.subr.bf16.mxu0 0
  %151 = vmatpush1.bf16.msra.mxu0 0
  %152 = vmatprep.subr.bf16.mxu0 0
  %153 = vmatpush1.bf16.msra.mxu0 0
  %154 = vmatprep.subr.bf16.mxu0 0
  %155 = vmatpush1.bf16.msra.mxu0 0
  %156 = vmatprep.mubr.bf16.mxu0 0
  %157 = vmatmul.mubr.bf16.gmra.mrb[0].mxu0 %v122
  %v158 = vpop.f32.mrb[0].mxu0
  %v159 = vadd.f32 0.0, %v158
  %v160 = vpop.f32.mrb[0].mxu0
  %v161 = vpop.f32.mrb[0].mxu0
  %v162 = vpop.f32.mrb[0].mxu0
  %163 = vdwg.mxu0
  %v164 = vpack.c.bf16 %v159, %v159
  %v165 = vpack.c.bf16 %v39, %v39
  %167 = vrot.lane.b32.xlu0 %v165, 32
  %v168 = vpop.permute.xlu0 %167
  %vm169 = vcmask 261120
  %v172 = vsel %vm169, %v164, %v168
  %v173 = vld [vmem:[%s3] sm:$0xf]
  %v174 = vld [vmem:[%s3 + $0x4] sm:$0xf]
  %v175 = vld [vmem:[%s3 + $0x8] sm:$0xf]
  %v176 = vld [vmem:[%s3 + $0xc] sm:$0xf]
  %v177 = vld [vmem:[%s3 + $0x10] sm:$0xf]
  %v178 = vld [vmem:[%s3 + $0x14] sm:$0xf]
  %v179 = vld [vmem:[%s3 + $0x18] sm:$0xf]
  %v180 = vld [vmem:[%s3 + $0x1c] sm:$0xf]
  %v181 = vld [vmem:[%s4] sm:$0x1]
  %v183 = vlaneseq
  %v184 = vshrl.u32 %v183, 7
  %v185 = vsub.s32 0, %v184
  %v186 = vrot.slane %v181, %v185
  %v196 = vunpack.c.l.b16 %v173
  %v197 = vunpack.c.l.b16 %v174
  %v198 = vunpack.c.l.b16 %v175
  %v199 = vunpack.c.l.b16 %v176
  %v200 = vunpack.c.l.b16 %v177
  %v201 = vunpack.c.l.b16 %v178
  %v202 = vunpack.c.l.b16 %v179
  %v203 = vunpack.c.l.b16 %v180
  %v204 = vpack.c.b16 %v197, %v196
  %v205 = vpack.c.b16 %v199, %v198
  %v206 = vpack.c.b16 %v201, %v200
  %v207 = vpack.c.b16 %v203, %v202
  %v212 = vsel %vm120, %v172, 0
  %214 = vmatprep.subr.bf16.mxu0 0
  %215 = vmatpush1.bf16.msra.mxu0 %v204
  %216 = vmatprep.subr.bf16.mxu0 0
  %217 = vmatpush1.bf16.msra.mxu0 %v205
  %218 = vmatprep.subr.bf16.mxu0 0
  %219 = vmatpush1.bf16.msra.mxu0 %v206
  %220 = vmatprep.subr.bf16.mxu0 0
  %221 = vmatpush1.bf16.msra.mxu0 %v207
  %222 = vmatprep.subr.bf16.mxu0 0
  %223 = vmatpush1.bf16.msra.mxu0 0
  %224 = vmatprep.subr.bf16.mxu0 0
  %225 = vmatpush1.bf16.msra.mxu0 0
  %226 = vmatprep.subr.bf16.mxu0 0
  %227 = vmatpush1.bf16.msra.mxu0 0
  %228 = vmatprep.subr.bf16.mxu0 0
  %229 = vmatpush1.bf16.msra.mxu0 0
  %230 = vmatprep.subr.bf16.mxu0 0
  %231 = vmatpush1.bf16.msra.mxu0 0
  %232 = vmatprep.subr.bf16.mxu0 0
  %233 = vmatpush1.bf16.msra.mxu0 0
  %234 = vmatprep.subr.bf16.mxu0 0
  %235 = vmatpush1.bf16.msra.mxu0 0
  %236 = vmatprep.subr.bf16.mxu0 0
  %237 = vmatpush1.bf16.msra.mxu0 0
  %238 = vmatprep.subr.bf16.mxu0 0
  %239 = vmatpush1.bf16.msra.mxu0 0
  %240 = vmatprep.subr.bf16.mxu0 0
  %241 = vmatpush1.bf16.msra.mxu0 0
  %242 = vmatprep.subr.bf16.mxu0 0
  %243 = vmatpush1.bf16.msra.mxu0 0
  %244 = vmatprep.subr.bf16.mxu0 0
  %245 = vmatpush1.bf16.msra.mxu0 0
  %246 = vmatprep.mubr.bf16.mxu0 0
  %247 = vmatmul.mubr.bf16.gmra.mrb[0].mxu0 %v212
  %v248 = vpop.f32.mrb[0].mxu0
  %v249 = vadd.f32 %v186, %v248
  %v250 = vpop.f32.mrb[0].mxu0
  %v251 = vpop.f32.mrb[0].mxu0
  %v252 = vpop.f32.mrb[0].mxu0
  %253 = vdwg.mxu0
  %v254 = vxor.u32 %v249, 2147483648
  %v255 = vmul.f32 %v254, 1.442695
  %v256 = vpow.pop %v255
  %v257 = vadd.f32 %v256, 1.0
  %v258 = vrcp.pop %v257
  %v259 = vmul.f32 1.0, %v258
  %v260 = vtanh.pop %v249
  %262 = vrot.lane.b32.xlu0 %v39, 96
  %v263 = vpop.permute.xlu0 %262
  %v265 = vmul.f32 %v259, %v263
  %267 = vrot.lane.b32.xlu0 %v260, 64
  %v268 = vpop.permute.xlu0 %267
  %v270 = vmul.f32 %v259, %v268
  %272 = vrot.lane.b32.xlu0 %v270, 32
  %v273 = vpop.permute.xlu0 %272
  %v275 = vadd.f32 %v265, %v273
  %v276 = vtanh.pop %v275
  %278 = vrot.lane.b32.xlu0 %v276, 64
  %v279 = vpop.permute.xlu0 %278
  %v281 = vmul.f32 %v259, %v279
  %v282 = vpack.c.bf16 %v281, %v281
  %284 = vrot.lane.b32.xlu0 %v282, 32
  %v285 = vpop.permute.xlu0 %284
  %v288 = vsel %vm169, %v285, %v165
  %s289 = scalar_lea.vmem %s3, 32
  %v290 = vld [vmem:[%s289] sm:$0xf]
  %v291 = vld [vmem:[%s289 + $0x4] sm:$0xf]
  %v292 = vld [vmem:[%s289 + $0x8] sm:$0xf]
  %v293 = vld [vmem:[%s289 + $0xc] sm:$0xf]
  %v294 = vld [vmem:[%s289 + $0x10] sm:$0xf]
  %v295 = vld [vmem:[%s289 + $0x14] sm:$0xf]
  %v296 = vld [vmem:[%s289 + $0x18] sm:$0xf]
  %v297 = vld [vmem:[%s289 + $0x1c] sm:$0xf]
  %s298 = scalar_lea.vmem %s4, 1
  %v299 = vld [vmem:[%s298] sm:$0x1]
  %v301 = vlaneseq
  %v302 = vshrl.u32 %v301, 7
  %v303 = vsub.s32 0, %v302
  %v304 = vrot.slane %v299, %v303
  %v314 = vunpack.c.l.b16 %v290
  %v315 = vunpack.c.l.b16 %v291
  %v316 = vunpack.c.l.b16 %v292
  %v317 = vunpack.c.l.b16 %v293
  %v318 = vunpack.c.l.b16 %v294
  %v319 = vunpack.c.l.b16 %v295
  %v320 = vunpack.c.l.b16 %v296
  %v321 = vunpack.c.l.b16 %v297
  %v322 = vpack.c.b16 %v315, %v314
  %v323 = vpack.c.b16 %v317, %v316
  %v324 = vpack.c.b16 %v319, %v318
  %v325 = vpack.c.b16 %v321, %v320
  %v330 = vsel %vm120, %v288, 0
  %332 = vmatprep.subr.bf16.mxu0 0
  %333 = vmatpush1.bf16.msra.mxu0 %v322
  %334 = vmatprep.subr.bf16.mxu0 0
  %335 = vmatpush1.bf16.msra.mxu0 %v323
  %336 = vmatprep.subr.bf16.mxu0 0
  %337 = vmatpush1.bf16.msra.mxu0 %v324
  %338 = vmatprep.subr.bf16.mxu0 0
  %339 = vmatpush1.bf16.msra.mxu0 %v325
  %340 = vmatprep.subr.bf16.mxu0 0
  %341 = vmatpush1.bf16.msra.mxu0 0
  %342 = vmatprep.subr.bf16.mxu0 0
  %343 = vmatpush1.bf16.msra.mxu0 0
  %344 = vmatprep.subr.bf16.mxu0 0
  %345 = vmatpush1.bf16.msra.mxu0 0
  %346 = vmatprep.subr.bf16.mxu0 0
  %347 = vmatpush1.bf16.msra.mxu0 0
  %348 = vmatprep.subr.bf16.mxu0 0
  %349 = vmatpush1.bf16.msra.mxu0 0
  %350 = vmatprep.subr.bf16.mxu0 0
  %351 = vmatpush1.bf16.msra.mxu0 0
  %352 = vmatprep.subr.bf16.mxu0 0
  %353 = vmatpush1.bf16.msra.mxu0 0
  %354 = vmatprep.subr.bf16.mxu0 0
  %355 = vmatpush1.bf16.msra.mxu0 0
  %356 = vmatprep.subr.bf16.mxu0 0
  %357 = vmatpush1.bf16.msra.mxu0 0
  %358 = vmatprep.subr.bf16.mxu0 0
  %359 = vmatpush1.bf16.msra.mxu0 0
  %360 = vmatprep.subr.bf16.mxu0 0
  %361 = vmatpush1.bf16.msra.mxu0 0
  %362 = vmatprep.subr.bf16.mxu0 0
  %363 = vmatpush1.bf16.msra.mxu0 0
  %364 = vmatprep.mubr.bf16.mxu0 0
  %365 = vmatmul.mubr.bf16.gmra.mrb[0].mxu0 %v330
  %v366 = vpop.f32.mrb[0].mxu0
  %v367 = vadd.f32 %v304, %v366
  %v368 = vpop.f32.mrb[0].mxu0
  %v369 = vpop.f32.mrb[0].mxu0
  %v370 = vpop.f32.mrb[0].mxu0
  %371 = vdwg.mxu0
  %v372 = vxor.u32 %v367, 2147483648
  %v373 = vmul.f32 %v372, 1.442695
  %v374 = vpow.pop %v373
  %v375 = vadd.f32 %v374, 1.0
  %v376 = vrcp.pop %v375
  %v377 = vmul.f32 1.0, %v376
  %v378 = vtanh.pop %v367
  %379 = vrot.lane.b32.xlu0 %v39, 64
  %v380 = vpop.permute.xlu0 %379
  %v382 = vmul.f32 %v377, %v380
  %384 = vrot.lane.b32.xlu0 %v378, 64
  %v385 = vpop.permute.xlu0 %384
  %v387 = vmul.f32 %v377, %v385
  %389 = vrot.lane.b32.xlu0 %v387, 32
  %v390 = vpop.permute.xlu0 %389
  %v392 = vadd.f32 %v382, %v390
  %v393 = vtanh.pop %v392
  %395 = vrot.lane.b32.xlu0 %v393, 64
  %v396 = vpop.permute.xlu0 %395
  %v398 = vmul.f32 %v377, %v396
  %400 = vrot.lane.b32.xlu0 %v281, 32
  %v401 = vpop.permute.xlu0 %400
  %404 = vrot.lane.b32.xlu0 %v398, 64
  %v405 = vpop.permute.xlu0 %404
  %408 = vrot.lane.b32.xlu0 %v275, 32
  %v409 = vpop.permute.xlu0 %408
  %412 = vrot.lane.b32.xlu0 %v392, 64
  %v413 = vpop.permute.xlu0 %412
  %v415 = vsel %vm169, %v401, %v405
  %v416 = vsel %vm120, %v415, %v409
  %vm417 = vcmask 785408
  %v418 = vsel %vm417, %v416, %v413
  %419 = vst [vmem:[%s8] sm:$0xff] %v418
  %v420 = vpack.c.bf16 %v398, %v398
  %v421 = vld [vmem:[%s5] sm:$0xf]
  %v422 = vld [vmem:[%s5 + $0x4] sm:$0xf]
  %v423 = vld [vmem:[%s5 + $0x8] sm:$0xf]
  %v424 = vld [vmem:[%s5 + $0xc] sm:$0xf]
  %v425 = vld [vmem:[%s6] sm:$0x1]
  %v427 = vlaneseq
  %v428 = vshrl.u32 %v427, 7
  %v429 = vsub.s32 0, %v428
  %v430 = vrot.slane %v425, %v429
  %433 = vrot.lane.b32.xlu0 %v420, 32
  %v434 = vpop.permute.xlu0 %433
  %v439 = vunpack.c.l.b16 %v421
  %v440 = vunpack.c.l.b16 %v422
  %v441 = vunpack.c.l.b16 %v423
  %v442 = vunpack.c.l.b16 %v424
  %v443 = vpack.c.b16 %v440, %v439
  %v444 = vpack.c.b16 %v442, %v441
  %v448 = vsel %vm169, %v434, 0
  %450 = vmatprep.subr.bf16.mxu0 0
  %451 = vmatpush1.bf16.msra.mxu0 %v443
  %452 = vmatprep.subr.bf16.mxu0 0
  %453 = vmatpush1.bf16.msra.mxu0 %v444
  %454 = vmatprep.subr.bf16.mxu0 0
  %455 = vmatpush1.bf16.msra.mxu0 0
  %456 = vmatprep.subr.bf16.mxu0 0
  %457 = vmatpush1.bf16.msra.mxu0 0
  %458 = vmatprep.subr.bf16.mxu0 0
  %459 = vmatpush1.bf16.msra.mxu0 0
  %460 = vmatprep.subr.bf16.mxu0 0
  %461 = vmatpush1.bf16.msra.mxu0 0
  %462 = vmatprep.subr.bf16.mxu0 0
  %463 = vmatpush1.bf16.msra.mxu0 0
  %464 = vmatprep.subr.bf16.mxu0 0
  %465 = vmatpush1.bf16.msra.mxu0 0
  %466 = vmatprep.subr.bf16.mxu0 0
  %467 = vmatpush1.bf16.msra.mxu0 0
  %468 = vmatprep.subr.bf16.mxu0 0
  %469 = vmatpush1.bf16.msra.mxu0 0
  %470 = vmatprep.subr.bf16.mxu0 0
  %471 = vmatpush1.bf16.msra.mxu0 0
  %472 = vmatprep.subr.bf16.mxu0 0
  %473 = vmatpush1.bf16.msra.mxu0 0
  %474 = vmatprep.subr.bf16.mxu0 0
  %475 = vmatpush1.bf16.msra.mxu0 0
  %476 = vmatprep.subr.bf16.mxu0 0
  %477 = vmatpush1.bf16.msra.mxu0 0
  %478 = vmatprep.subr.bf16.mxu0 0
  %479 = vmatpush1.bf16.msra.mxu0 0
  %480 = vmatprep.subr.bf16.mxu0 0
  %481 = vmatpush1.bf16.msra.mxu0 0
  %482 = vmatprep.mubr.bf16.mxu0 0
  %483 = vmatmul.mubr.bf16.gmra.mrb[0].mxu0 %v448
  %v484 = vpop.f32.mrb[0].mxu0
  %v485 = vadd.f32 %v430, %v484
  %v486 = vpop.f32.mrb[0].mxu0
  %v487 = vpop.f32.mrb[0].mxu0
  %v488 = vpop.f32.mrb[0].mxu0
  %489 = vdwg.mxu0
  %490 = vst [vmem:[%s7] sm:$0xff] %v485
  // Predicated region
  $region30: #{decoder_forward.1} parent=0 // pred_check
    _
  $region31: #{decoder_forward.1} parent=0 // pred_check_branch
    %492 = sbr.rel (0) target = $region33
  $region32: #{decoder_forward.1} parent=0 // pred_region
    _
  $region33: #{decoder_forward.1} parent=0 // pred_fallthru
    _
  // Predicated region
  $region34: #{decoder_forward.1} parent=0 // pred_check
    _
  $region35: #{decoder_forward.1} parent=0 // pred_check_branch
    %494 = sbr.rel (0) target = $region37
  $region36: #{decoder_forward.1} parent=0 // pred_region
    _
  $region37: #{decoder_forward.1} parent=0 // pred_fallthru
    _
  // Predicated region
  $region38: #{decoder_forward.1} parent=0 // pred_check
    _
  $region39: #{decoder_forward.1} parent=0 // pred_check_branch
    %496 = sbr.rel (0) target = $region41
  $region40: #{decoder_forward.1} parent=0 // pred_region
    _
  $region41: #{decoder_forward.1} parent=0 // pred_fallthru
    _
  // Predicated region
  $region42: #{decoder_forward.1} parent=0 // pred_check
    _
  $region43: #{decoder_forward.1} parent=0 // pred_check_branch
    %498 = sbr.rel (0) target = $region45
  $region44: #{decoder_forward.1} parent=0 // pred_region
    _
  $region45: #{decoder_forward.1} parent=0 // pred_fallthru
    _

</llo_original>
